<compile_context>
chip_gen: v7x
topology: tpu7x:2x2x1
jax: 0.10.0
libtpu: 0.0.40
codegen_flags: <defaults>
</compile_context>

<pallas_src>
import functools

import numpy as np
import jax
import jax.numpy as jnp
from jax import lax
from jax.experimental import pallas as pl
from jax.experimental.pallas import tpu as pltpu

EPS = 1e-8                       # torch.cosine_similarity eps
LANE = 128                       # TPU lane width (pad class / feature axes to this)
ROW_TILE = 256                   # default row tile (multiple of 8; >=256 for pipelining)
VMEM_LIMIT = 64 * 1024 * 1024    # explicit scoped-VMEM budget (fits v5e/v6e/v7x)

_DTYPES = {"float32": jnp.float32, "bfloat16": jnp.bfloat16}


def _round_up(x, m):
    return ((x + m - 1) // m) * m


def _pad2d(a, rows, cols):
    r, c = a.shape
    return jnp.pad(a, ((0, rows - r), (0, cols - c)))


# ----------------------------------------------------------------------------
# Kernel 1: fused final_proj + NCE cosine similarities (untied projection path)
# ----------------------------------------------------------------------------
def _fused_nce_kernel(x_ref, w_ref, b_ref, e_ref, en_ref, o_ref, *, inv_temp):
    """One row tile:
       x_ref  [TM, E]   selected encoder rows (mxu dtype)
       w_ref  [E,  Fp]  per-dictionary projection weights (mxu dtype, cols zero-padded)
       b_ref  [1,  Fp]  bias (f32)
       e_ref  [Kp, Fp]  label embeddings (mxu dtype, rows/cols zero-padded)
       en_ref [1,  Kp]  label-embedding L2 norms (f32)
       o_ref  [TM, Kp]  un-masked cosine similarity / logit_temp (f32, lane dense)
    """
    # projection on the MXU, f32 accumulation; bias added in f32
    px = jnp.dot(x_ref[...], w_ref[...],
                 preferred_element_type=jnp.float32) + b_ref[...]        # [TM, Fp]
    # row norms in f32 (VPU + XLU reduce)
    xn = jnp.sqrt(jnp.sum(px * px, axis=-1, keepdims=True))              # [TM, 1]
    # cosine numerators against every class row (MXU, contract feature axis)
    nd = lax.dot_general(px.astype(e_ref.dtype), e_ref[...],
                         (((1,), (1,)), ((), ())),
                         preferred_element_type=jnp.float32)             # [TM, Kp]
    # denominator via VPU broadcast multiply (no K=1 MXU matmul), exact torch eps clamp
    denom = jnp.maximum(xn * en_ref[...], EPS)
    o_ref[...] = (nd / denom) * inv_temp


@functools.lru_cache(maxsize=None)
def _build_fused_nce(n_rows_p, e_dim, f_p, k_p, tm, inv_temp):
    kernel = functools.partial(_fused_nce_kernel, inv_temp=inv_temp)
    return jax.jit(pl.pallas_call(
        kernel,
        out_shape=jax.ShapeDtypeStruct((n_rows_p, k_p), jnp.float32),
        grid=(n_rows_p // tm,),
        in_specs=[
            pl.BlockSpec((tm, e_dim), lambda i: (i, 0)),    # x rows: tiled
            pl.BlockSpec((e_dim, f_p), lambda i: (0, 0)),   # W slice: VMEM-resident
            pl.BlockSpec((1, f_p), lambda i: (0, 0)),       # bias:    VMEM-resident
            pl.BlockSpec((k_p, f_p), lambda i: (0, 0)),     # embs:    VMEM-resident
            pl.BlockSpec((1, k_p), lambda i: (0, 0)),       # norms:   VMEM-resident
        ],
        out_specs=pl.BlockSpec((tm, k_p), lambda i: (i, 0)),
        compiler_params=pltpu.CompilerParams(
            dimension_semantics=("parallel",),
            vmem_limit_bytes=VMEM_LIMIT),
    ))


# ----------------------------------------------------------------------------
# Kernels 2+3: tied-projection fallback (shared proj, then per-dictionary cosine)
# ----------------------------------------------------------------------------
def _proj_kernel(x_ref, w_ref, b_ref, o_ref):
    o_ref[...] = jnp.dot(x_ref[...], w_ref[...],
                         preferred_element_type=jnp.float32) + b_ref[...]


@functools.lru_cache(maxsize=None)
def _build_proj(n_rows_p, e_dim, f_p, tm):
    return jax.jit(pl.pallas_call(
        _proj_kernel,
        out_shape=jax.ShapeDtypeStruct((n_rows_p, f_p), jnp.float32),
        grid=(n_rows_p // tm,),
        in_specs=[
            pl.BlockSpec((tm, e_dim), lambda i: (i, 0)),
            pl.BlockSpec((e_dim, f_p), lambda i: (0, 0)),
            pl.BlockSpec((1, f_p), lambda i: (0, 0)),
        ],
        out_specs=pl.BlockSpec((tm, f_p), lambda i: (i, 0)),
        compiler_params=pltpu.CompilerParams(
            dimension_semantics=("parallel",),
            vmem_limit_bytes=VMEM_LIMIT),
    ))


def _cos_kernel(px_ref, e_ref, en_ref, o_ref, *, inv_temp):
    px = px_ref[...]                                                      # [TM, Fp] f32
    xn = jnp.sqrt(jnp.sum(px * px, axis=-1, keepdims=True))
    nd = lax.dot_general(px.astype(e_ref.dtype), e_ref[...],
                         (((1,), (1,)), ((), ())),
                         preferred_element_type=jnp.float32)
    denom = jnp.maximum(xn * en_ref[...], EPS)
    o_ref[...] = (nd / denom) * inv_temp


@functools.lru_cache(maxsize=None)
def _build_cos(n_rows_p, f_p, k_p, tm, inv_temp):
    kernel = functools.partial(_cos_kernel, inv_temp=inv_temp)
    return jax.jit(pl.pallas_call(
        kernel,
        out_shape=jax.ShapeDtypeStruct((n_rows_p, k_p), jnp.float32),
        grid=(n_rows_p // tm,),
        in_specs=[
            pl.BlockSpec((tm, f_p), lambda i: (i, 0)),
            pl.BlockSpec((k_p, f_p), lambda i: (0, 0)),
            pl.BlockSpec((1, k_p), lambda i: (0, 0)),
        ],
        out_specs=pl.BlockSpec((tm, k_p), lambda i: (i, 0)),
        compiler_params=pltpu.CompilerParams(
            dimension_semantics=("parallel",),
            vmem_limit_bytes=VMEM_LIMIT),
    ))


# ----------------------------------------------------------------------------
# SpeechEncoderPostnet (Pallas version)
# ----------------------------------------------------------------------------
class SpeechEncoderPostnetPallas:
    def __init__(self, num_classes, encoder_embed_dim, final_dim,
                 untie_final_proj=True, logit_temp=0.1,
                 skip_masked=False, skip_nomask=False, seed=0,
                 mxu_dtype="float32", row_tile=ROW_TILE):
        self.num_classes = list(num_classes)
        self.encoder_embed_dim = int(encoder_embed_dim)
        self.final_dim = int(final_dim)
        self.untie_final_proj = bool(untie_final_proj)
        self.logit_temp = float(logit_temp)
        self.skip_masked = bool(skip_masked)
        self.skip_nomask = bool(skip_nomask)
        self.mxu_dtype = mxu_dtype           # "float32" (exact) | "bfloat16" (v6e/v7x MXU)
        assert row_tile % 8 == 0
        self.row_tile = int(row_tile)
        # TODO(synk): target_glu (optional GLU applied to targets) is not implemented.

        n_dict = len(self.num_classes)
        out_dim = self.final_dim * n_dict if self.untie_final_proj else self.final_dim

        k0, k1, k2 = jax.random.split(jax.random.PRNGKey(seed), 3)
        # nn.init.uniform_ -> U[0,1)
        self.label_embs_concat = jax.random.uniform(
            k0, (sum(self.num_classes), self.final_dim), dtype=jnp.float32)
        # torch Linear default init: U(-1/sqrt(fan_in), 1/sqrt(fan_in)); stored as [E, out]
        bound = 1.0 / np.sqrt(self.encoder_embed_dim)
        self.proj_w = jax.random.uniform(
            k1, (self.encoder_embed_dim, out_dim),
            minval=-bound, maxval=bound, dtype=jnp.float32)
        self.proj_b = jax.random.uniform(
            k2, (out_dim,), minval=-bound, maxval=bound, dtype=jnp.float32)

        offs = np.cumsum([0] + self.num_classes)
        self.label_embs_list = [
            self.label_embs_concat[int(offs[i]):int(offs[i + 1])]
            for i in range(n_dict)
        ]

        # ---------- static padded parameter views (lane-dense, MXU-friendly) ----------
        self._fp = _round_up(self.final_dim, LANE)
        self._kp = [_round_up(k, LANE) for k in self.num_classes]
        self._embs_pad = []   # [Kp, Fp] f32 (zero-padded)
        self._en_row = []     # [1, Kp]  f32 class-embedding L2 norms
        self._eq_kk = []      # [K, K]   bool row-equality table (exact neg_is_pos)
        for i, embs in enumerate(self.label_embs_list):
            ep = _pad2d(embs, self._kp[i], self._fp)
            self._embs_pad.append(ep)
            self._en_row.append(jnp.sqrt(jnp.sum(ep * ep, axis=-1))[None, :])
            # TODO(synk): O(K^2*F) once at init; chunk (or use target==class-index when
            # embedding rows are known unique) for very large dictionaries.
            self._eq_kk.append(
                jnp.all(embs[:, None, :] == embs[None, :, :], axis=-1))

        if self.untie_final_proj:
            self._w_pad = [
                _pad2d(self.proj_w[:, i * self.final_dim:(i + 1) * self.final_dim],
                       self.encoder_embed_dim, self._fp)
                for i in range(n_dict)]
            self._b_pad = [
                _pad2d(self.proj_b[i * self.final_dim:(i + 1) * self.final_dim]
                       .reshape(1, -1), 1, self._fp)
                for i in range(n_dict)]
        else:
            self._w_pad = [_pad2d(self.proj_w, self.encoder_embed_dim, self._fp)]
            self._b_pad = [_pad2d(self.proj_b.reshape(1, -1), 1, self._fp)]

    # cheap O(N*K) glue on the lane-dense kernel output:
    #   pos column == cosine at the target class; neg_is_pos -> -inf; [pos | negs].
    # (torch pads y with zero rows when len(target) < N; targets align with frames
    #  here, so that pad is a no-op.)
    def _post_process(self, cos_full, n_rows, dict_i, targets_sel):
        k = self.num_classes[dict_i]
        t = jnp.asarray(targets_sel, dtype=jnp.int32)
        cos = cos_full[:n_rows, :k]                              # strip row/col padding
        pos = jnp.take_along_axis(cos, t[:, None], axis=1)       # [N, 1]
        nip = self._eq_kk[dict_i][t]                             # [N, K] exact neg_is_pos
        negs = jnp.where(nip, -jnp.inf, cos)
        return jnp.concatenate([pos, negs], axis=1)              # [N, K+1]

    def forward(self, x, padding_mask, mask_indices, target_list):
        # x: jnp [B,T,E]; padding_mask/mask_indices: bool [B,T] (host numpy);
        # target_list: list of int [B,T]
        B, T, E = x.shape
        x_flat = x.reshape(B * T, E)
        n_dict = len(target_list)
        mxu = _DTYPES[self.mxu_dtype]
        inv_temp = 1.0 / self.logit_temp
        tm = self.row_tile

        pm = np.asarray(padding_mask, dtype=bool)
        mi = np.asarray(mask_indices, dtype=bool)

        # TODO(synk): x[masked_indices] has a data-dependent shape; indices are computed
        # on host and the row gather stays in plain JAX.  Row counts are bucketed
        # (padded to a multiple of row_tile) so kernel shapes / compiles are reused.
        def run_branch(sel_flat_idx):
            n = int(sel_flat_idx.shape[0])
            if n == 0:
                return [jnp.zeros((0, k + 1), jnp.float32) for k in self.num_classes]
            n_p = _round_up(n, tm)
            idx_pad = np.zeros((n_p,), dtype=np.int32)
            idx_pad[:n] = sel_flat_idx
            xs = jnp.take(x_flat, jnp.asarray(idx_pad), axis=0)          # [n_p, E]

            targets_sel = []
            for t in target_list:
                ti = np.asarray(t).reshape(-1)[sel_flat_idx]
                assert (ti >= 0).all(), f"target has negative values: {ti}"
                targets_sel.append(ti.astype(np.int32))

            logits = []
            if self.untie_final_proj:
                xs_c = xs.astype(mxu)
                for i in range(n_dict):
                    call = _build_fused_nce(n_p, E, self._fp, self._kp[i], tm, inv_temp)
                    cos = call(xs_c,
                               self._w_pad[i].astype(mxu),
                               self._b_pad[i],
                               self._embs_pad[i].astype(mxu),
                               self._en_row[i])
                    logits.append(self._post_process(cos, n, i, targets_sel[i]))
            else:
                proj_call = _build_proj(n_p, E, self._fp, tm)
                proj = proj_call(xs.astype(mxu),
                                 self._w_pad[0].astype(mxu),
                                 self._b_pad[0])                          # [n_p, Fp] f32
                for i in range(n_dict):
                    call = _build_cos(n_p, self._fp, self._kp[i], tm, inv_temp)
                    cos = call(proj, self._embs_pad[i].astype(mxu), self._en_row[i])
                    logits.append(self._post_process(cos, n, i, targets_sel[i]))
            return logits

        if not self.skip_masked:
            m_idx = np.nonzero((~pm & mi).reshape(-1))[0]
            logit_m_list = run_branch(m_idx)
        else:
            logit_m_list = [None] * n_dict

        if not self.skip_nomask:
            u_idx = np.nonzero((~pm & ~mi).reshape(-1))[0]
            logit_u_list = run_branch(u_idx)
        else:
            logit_u_list = [None] * n_dict

        return {"logit_m_list": logit_m_list,
                "logit_u_list": logit_u_list,
                "padding_mask": jnp.asarray(pm)}


# ----------------------------------------------------------------------------
# Pure-JAX reference (mirrors the PyTorch forward) for a sanity check
# ----------------------------------------------------------------------------
def reference_forward(mod, x, padding_mask, mask_indices, target_list):
    B, T, E = x.shape
    x_flat = x.reshape(B * T, E)

    def compute_nce(px, pos, negs):
        neg_is_pos = jnp.all(pos[None] == negs, axis=-1)            # [K,N]
        targets = jnp.concatenate([pos[None], negs], axis=0)        # [K+1,N,F]
        xn = jnp.sqrt(jnp.sum(px * px, axis=-1))
        tn = jnp.sqrt(jnp.sum(targets * targets, axis=-1))
        logits = jnp.sum(px[None] * targets, axis=-1) / jnp.maximum(xn[None] * tn, EPS)
        logits = logits / mod.logit_temp
        logits = logits.at[1:].set(jnp.where(neg_is_pos, -jnp.inf, logits[1:]))
        return logits.T

    def branch(idx):
        xs = jnp.take(x_flat, jnp.asarray(idx, jnp.int32), axis=0)
        proj = xs @ mod.proj_w + mod.proj_b
        outs = []
        for i, t in enumerate(target_list):
            px = (proj[:, i * mod.final_dim:(i + 1) * mod.final_dim]
                  if mod.untie_final_proj else proj)
            ti = np.asarray(t).reshape(-1)[idx]
            embs = mod.label_embs_list[i]
            y = jnp.take(embs, jnp.asarray(ti, jnp.int32), axis=0)
            negs = jnp.broadcast_to(embs[:, None, :],
                                    (embs.shape[0], px.shape[0], embs.shape[1]))
            outs.append(compute_nce(px, y, negs))
        return outs

    pm = np.asarray(padding_mask, bool)
    mi = np.asarray(mask_indices, bool)
    m_idx = np.nonzero((~pm & mi).reshape(-1))[0]
    u_idx = np.nonzero((~pm & ~mi).reshape(-1))[0]
    return branch(m_idx), branch(u_idx)


def _assert_close(a, b, rtol=1e-4, atol=1e-4):
    a = np.asarray(a)
    b = np.asarray(b)
    assert a.shape == b.shape, (a.shape, b.shape)
    fa, fb = np.isfinite(a), np.isfinite(b)
    assert np.array_equal(fa, fb), "inf pattern mismatch"
    assert np.allclose(a[fa], b[fb], rtol=rtol, atol=atol), "value mismatch"


if __name__ == "__main__":
    B, T, E = 2, 16, 32
    final_dim = 16
    num_classes = [10, 12]
    row_tile = 8        # tiny tile at toy sizes so the row grid has >1 step

    key = jax.random.PRNGKey(0)
    kx, kt0, kt1 = jax.random.split(key, 3)
    x = jax.random.normal(kx, (B, T, E), dtype=jnp.float32)

    padding_mask = np.zeros((B, T), dtype=bool)
    padding_mask[:, -2:] = True                  # last 2 frames are padding
    mask_indices = np.zeros((B, T), dtype=bool)
    mask_indices[:, 0::2] = True                 # mask even frames

    target_list = [
        np.asarray(jax.random.randint(kt0, (B, T), 0, num_classes[0])),
        np.asarray(jax.random.randint(kt1, (B, T), 0, num_classes[1])),
    ]

    # 1) untied projection (HuBERT default), exact f32 MXU path
    mod = SpeechEncoderPostnetPallas(
        num_classes=num_classes, encoder_embed_dim=E, final_dim=final_dim,
        untie_final_proj=True, logit_temp=0.1,
        skip_masked=False, skip_nomask=False, seed=0,
        mxu_dtype="float32", row_tile=row_tile)
    res = mod.forward(x, padding_mask, mask_indices, target_list)
    jax.block_until_ready((res["logit_m_list"], res["logit_u_list"]))
    ref_m, ref_u = reference_forward(mod, x, padding_mask, mask_indices, target_list)
    for got, ref in zip(res["logit_m_list"], ref_m):
        _assert_close(got, ref)
    for got, ref in zip(res["logit_u_list"], ref_u):
        _assert_close(got, ref)

    # 2) bf16 MXU operands (v6e/v7x fast path), f32 accumulation / f32 elementwise.
    #    Looser tolerance: operands are quantized to bf16 vs the f32 reference.
    mod.mxu_dtype = "bfloat16"
    res_bf = mod.forward(x, padding_mask, mask_indices, target_list)
    jax.block_until_ready((res_bf["logit_m_list"], res_bf["logit_u_list"]))
    for got, ref in zip(res_bf["logit_m_list"], ref_m):
        _assert_close(got, ref, rtol=5e-2, atol=2e-1)
    for got, ref in zip(res_bf["logit_u_list"], ref_u):
        _assert_close(got, ref, rtol=5e-2, atol=2e-1)

    # 3) tied projection path (shared proj kernel + per-dictionary cosine kernel), f32
    mod2 = SpeechEncoderPostnetPallas(
        num_classes=num_classes, encoder_embed_dim=E, final_dim=final_dim,
        untie_final_proj=False, logit_temp=0.1,
        skip_masked=False, skip_nomask=False, seed=0,
        mxu_dtype="float32", row_tile=row_tile)
    res2 = mod2.forward(x, padding_mask, mask_indices, target_list)
    jax.block_until_ready((res2["logit_m_list"], res2["logit_u_list"]))
    ref2_m, ref2_u = reference_forward(mod2, x, padding_mask, mask_indices, target_list)
    for got, ref in zip(res2["logit_m_list"], ref2_m):
        _assert_close(got, ref)
    for got, ref in zip(res2["logit_u_list"], ref2_u):
        _assert_close(got, ref)

    print("KERNEL_OK")
</pallas_src>

<mosaic_0001>
module attributes {stable_mosaic.version = 11 : i64} {
  func.func @_fused_nce_kernel(%arg0: i32, %arg1: memref<8x32xf32, #tpu.memory_space<vmem>>, %arg2: memref<32x128xf32, #tpu.memory_space<vmem>>, %arg3: memref<1x128xf32, #tpu.memory_space<vmem>>, %arg4: memref<128x128xf32, #tpu.memory_space<vmem>>, %arg5: memref<1x128xf32, #tpu.memory_space<vmem>>, %arg6: memref<8x128xf32, #tpu.memory_space<vmem>>) attributes {dimension_semantics = [#tpu.dimension_semantics<parallel>], iteration_bounds = array<i64: 2>, scalar_prefetch = 0 : i64, scratch_operands = 0 : i64, tpu.core_type = #tpu.core_type<tc>, window_params = [{transform_indices = @transform_0, window_bounds = array<i64: 8, 32>}, {pipeline_mode = #tpu.pipeline_mode<synchronous>, transform_indices = @transform_1, window_bounds = array<i64: 32, 128>}, {pipeline_mode = #tpu.pipeline_mode<synchronous>, transform_indices = @transform_2, window_bounds = array<i64: 1, 128>}, {pipeline_mode = #tpu.pipeline_mode<synchronous>, transform_indices = @transform_3, window_bounds = array<i64: 128, 128>}, {pipeline_mode = #tpu.pipeline_mode<synchronous>, transform_indices = @transform_4, window_bounds = array<i64: 1, 128>}, {transform_indices = @transform_5, window_bounds = array<i64: 8, 128>}]} {
    %c0 = arith.constant 0 : index
    %c0_0 = arith.constant 0 : index
    %0 = vector.load %arg1[%c0, %c0_0] : memref<8x32xf32, #tpu.memory_space<vmem>>, vector<8x32xf32>
    %c0_1 = arith.constant 0 : index
    %c0_2 = arith.constant 0 : index
    %1 = vector.load %arg2[%c0_1, %c0_2] : memref<32x128xf32, #tpu.memory_space<vmem>>, vector<32x128xf32>
    %cst = arith.constant dense<0.000000e+00> : vector<8x128xf32>
    %2 = tpu.matmul %0, %1, %cst {dimension_numbers = #tpu.dot_dimension_numbers<[1], [0], [0], [1], [0, 0, 1, 1], [], []>} : vector<8x32xf32>, vector<32x128xf32>, vector<8x128xf32> -> vector<8x128xf32>
    %c0_3 = arith.constant 0 : index
    %c0_4 = arith.constant 0 : index
    %3 = vector.load %arg3[%c0_3, %c0_4] : memref<1x128xf32, #tpu.memory_space<vmem>>, vector<1x128xf32>
    %4 = vector.broadcast %3 : vector<1x128xf32> to vector<8x128xf32>
    %5 = arith.addf %2, %4 : vector<8x128xf32>
    %6 = arith.mulf %5, %5 : vector<8x128xf32>
    %cst_5 = arith.constant dense<0.000000e+00> : vector<8xf32>
    %7 = vector.multi_reduction <add>, %6, %cst_5 [1] : vector<8x128xf32> to vector<8xf32>
    %8 = vector.shape_cast %7 : vector<8xf32> to vector<8x1xf32>
    %9 = math.sqrt %8 : vector<8x1xf32>
    %c0_6 = arith.constant 0 : index
    %c0_7 = arith.constant 0 : index
    %10 = vector.load %arg4[%c0_6, %c0_7] : memref<128x128xf32, #tpu.memory_space<vmem>>, vector<128x128xf32>
    %cst_8 = arith.constant dense<0.000000e+00> : vector<8x128xf32>
    %11 = tpu.matmul %5, %10, %cst_8 {dimension_numbers = #tpu.dot_dimension_numbers<[1], [1], [0], [0], [0, 0, 1, 0], [], []>} : vector<8x128xf32>, vector<128x128xf32>, vector<8x128xf32> -> vector<8x128xf32>
    %c0_9 = arith.constant 0 : index
    %c0_10 = arith.constant 0 : index
    %12 = vector.load %arg5[%c0_9, %c0_10] : memref<1x128xf32, #tpu.memory_space<vmem>>, vector<1x128xf32>
    %13 = vector.broadcast %9 : vector<8x1xf32> to vector<8x128xf32>
    %14 = vector.broadcast %12 : vector<1x128xf32> to vector<8x128xf32>
    %15 = arith.mulf %13, %14 : vector<8x128xf32>
    %cst_11 = arith.constant 9.99999993E-9 : f32
    %16 = vector.broadcast %cst_11 : f32 to vector<8x128xf32>
    %17 = arith.maximumf %15, %16 : vector<8x128xf32>
    %18 = arith.divf %11, %17 : vector<8x128xf32>
    %cst_12 = arith.constant 1.000000e+01 : f32
    %19 = vector.broadcast %cst_12 : f32 to vector<8x128xf32>
    %20 = arith.mulf %18, %19 : vector<8x128xf32>
    %c0_13 = arith.constant 0 : index
    %c0_14 = arith.constant 0 : index
    %21 = vector.load %arg6[%c0_13, %c0_14] : memref<8x128xf32, #tpu.memory_space<vmem>>, vector<8x128xf32>
    tpu.vector_store %arg6[%c0_13, %c0_14], %20 {strides = array<i32>} : memref<8x128xf32, #tpu.memory_space<vmem>>, vector<8x128xf32>,
    return
  }
  func.func @transform_0(%arg0: i32) -> (i32, i32) {
    %c0_i32 = arith.constant 0 : i32
    %c0_i32_0 = arith.constant 0 : i32
    return %arg0, %c0_i32 : i32, i32
  }
  func.func @transform_1(%arg0: i32) -> (i32, i32) {
    %c0_i32 = arith.constant 0 : i32
    %c0_i32_0 = arith.constant 0 : i32
    %c0_i32_1 = arith.constant 0 : i32
    return %c0_i32, %c0_i32_0 : i32, i32
  }
  func.func @transform_2(%arg0: i32) -> (i32, i32) {
    %c0_i32 = arith.constant 0 : i32
    %c0_i32_0 = arith.constant 0 : i32
    %c0_i32_1 = arith.constant 0 : i32
    return %c0_i32, %c0_i32_0 : i32, i32
  }
  func.func @transform_3(%arg0: i32) -> (i32, i32) {
    %c0_i32 = arith.constant 0 : i32
    %c0_i32_0 = arith.constant 0 : i32
    %c0_i32_1 = arith.constant 0 : i32
    return %c0_i32, %c0_i32_0 : i32, i32
  }
  func.func @transform_4(%arg0: i32) -> (i32, i32) {
    %c0_i32 = arith.constant 0 : i32
    %c0_i32_0 = arith.constant 0 : i32
    %c0_i32_1 = arith.constant 0 : i32
    return %c0_i32, %c0_i32_0 : i32, i32
  }
  func.func @transform_5(%arg0: i32) -> (i32, i32) {
    %c0_i32 = arith.constant 0 : i32
    %c0_i32_0 = arith.constant 0 : i32
    return %arg0, %c0_i32 : i32, i32
  }
}

</mosaic_0001>

<llo_original>
// kernel: tpu_custom_call.1
$region0: #{tpu_custom_call.1}
  #allocation0 [shape = 'u32[]', space=smem, size = 0x4, offset = 0x4, fixed_abs, tag = 'smem constant byte address 0x4 - core index']
  #allocation1 [shape = 'u32[144,128]{1,0:T(1,128)}', space=vmem, size = 0x12000, scoped, tag = 'internal scratch']
  %s0 = inlined_call_operand.hbm [shape: f32[16,32], index: 0, kind: input, shape index: {}]
  %s1 = inlined_call_operand.hbm [shape: f32[32,128], index: 1, kind: input, shape index: {}]
  %s2 = inlined_call_operand.hbm [shape: f32[1,128], index: 2, kind: input, shape index: {}]
  %s3 = inlined_call_operand.hbm [shape: f32[128,128], index: 3, kind: input, shape index: {}]
  %s4 = inlined_call_operand.hbm [shape: f32[1,128], index: 4, kind: input, shape index: {}]
  %s5 = inlined_call_operand.hbm [shape: f32[16,128], index: 5, kind: output, shape index: {}]
  %s6 = sld [smem:[#allocation0]]
  $region73: #{tpu_custom_call.1} parent=0
    _
  %s8 = ssub.s32 1, %s6
  %s9 = scalar_select 0, %s8, %s6
  $region1: #{tpu_custom_call.1} parent=0
    #allocation2 [shape = 'u8[8192]{0}', space=vmem, size = 0x2000, scoped, tag = 'input window, operand 0']
    #allocation3 [shape = 's32[2]{0}', space=sflag, size = 0x8, scoped, tag = 'scoped memory for tpu_custom_call.1']
    #allocation4 [shape = 's32[2]{0}', space=sflag, size = 0x8, scoped, tag = 'scoped memory for tpu_custom_call.1']
    #allocation5 [shape = 'u8[16384]{0}', space=vmem, size = 0x4000, scoped, tag = 'input window, operand 1, single buffered']
    #allocation6 [shape = 's32[1]{0}', space=sflag, size = 0x4, scoped, tag = 'scoped memory for tpu_custom_call.1']
    #allocation7 [shape = 'u8[512]{0}', space=vmem, size = 0x400, scoped, tag = 'input window, operand 2, single buffered']
    #allocation8 [shape = 'u8[65536]{0}', space=vmem, size = 0x10000, scoped, tag = 'input window, operand 3, single buffered']
    #allocation9 [shape = 's32[1]{0}', space=sflag, size = 0x4, scoped, tag = 'scoped memory for tpu_custom_call.1']
    #allocation10 [shape = 'u8[512]{0}', space=vmem, size = 0x400, scoped, tag = 'input window, operand 4, single buffered']
    #allocation11 [shape = 'u8[8192]{0}', space=vmem, size = 0x2000, scoped, tag = 'output window, operand 0']
    %10 = vsyncpa [#allocation3], 0
    %s11 = scalar_lea.sflag [#allocation3], 1
    %12 = vsyncpa %s11, 0
    %13 = vsyncpa [#allocation6], 0
    %14 = vsyncpa [#allocation9], 0
    %15 = vsyncpa [#allocation4], 0
    %s16 = scalar_lea.sflag [#allocation4], 1
    %17 = vsyncpa %s16, 0
    loop: start=0, step=1, limit=4
    $region2: #{tpu_custom_call.1} parent=1 // loop_pre_header
      _
    $region3: #{tpu_custom_call.1} parent=1 // loop_header
      %s19 = sphi 0, %s23
      %p20 = scmp.ge.s32.totalorder %s19, 4
      %s29 = sphi 0, %s31
      %s32 = sphi 0, %s29
      %s33 = sphi 0, %s32
      %s49 = sphi 0, %s33
      %s53 = sphi 0, %s53
      %s55 = sphi 0, %s53
      %s56 = sphi 0, %s55
      %s70 = sphi 0, %s56
      %s74 = sphi 0, %s74
      %s76 = sphi 0, %s74
      %s77 = sphi 0, %s76
      %s91 = sphi 0, %s77
      %s95 = sphi 0, %s95
      %s97 = sphi 0, %s95
      %s98 = sphi 0, %s97
      %s112 = sphi 0, %s98
      %s116 = sphi 0, %s116
      %s118 = sphi 0, %s116
      %s119 = sphi 0, %s118
      %s133 = sphi 0, %s119
      %s139 = sphi 0, %s141
      %s142 = sphi 0, %s139
      %s143 = sphi 0, %s142
      %s159 = sphi 0, %s143
    $region4: #{tpu_custom_call.1} parent=1 // loop_header_branch
      %22 = sbr.rel (%p20) target = $region8
    $region5: #{tpu_custom_call.1} parent=1 // loop_body
      %s24 = ssub.s32 %s19, 1
      %s25 = ssub.s32 %s19, 2
      %s26 = sadd.s32 %s19, 1
      %s27 = ssub.s32 %s19, %s26
      %p28 = scmp.eq.s32.totalorder %s27, 0
      %s30 = sadd.s32 %s29, 1
      %s31 = scalar_select %p28, %s29, %s30
      %p34 = pneg %p28
      %p35 = scmp.eq.s32.totalorder %s19, 1
      %p36 = por %p34, %p35
      %p37 = scmp.ne.s32.totalorder %s29, %s32
      %p38 = scmp.eq.s32.totalorder %s19, 0
      %p39 = por %p37, %p38
      %p40 = scmp.ne.s32.totalorder %s29, %s32
      %p41 = scmp.eq.s32.totalorder %s24, 1
      %p42 = por %p40, %p41
      %p43 = scmp.ne.s32.totalorder %s32, %s33
      %p44 = scmp.eq.s32.totalorder %s24, 0
      %p45 = por %p43, %p44
      %p46 = scmp.ne.s32.totalorder %s32, %s33
      %p47 = scmp.eq.s32.totalorder %s25, 1
      %p48 = por %p46, %p47
      %p50 = scmp.ne.s32.totalorder %s33, %s49
      %p51 = scmp.eq.s32.totalorder %s25, 0
      %p52 = por %p50, %p51
      %s54 = sadd.s32 %s53, 1
      %p57 = scmp.eq.s32.totalorder %s19, 1
      %p58 = scmp.ne.s32.totalorder %s53, %s55
      %p59 = scmp.eq.s32.totalorder %s19, 0
      %p60 = por %p58, %p59
      %p61 = scmp.ne.s32.totalorder %s53, %s55
      %p62 = scmp.eq.s32.totalorder %s24, 1
      %p63 = por %p61, %p62
      %p64 = scmp.ne.s32.totalorder %s55, %s56
      %p65 = scmp.eq.s32.totalorder %s24, 0
      %p66 = por %p64, %p65
      %p67 = scmp.ne.s32.totalorder %s55, %s56
      %p68 = scmp.eq.s32.totalorder %s25, 1
      %p69 = por %p67, %p68
      %p71 = scmp.ne.s32.totalorder %s56, %s70
      %p72 = scmp.eq.s32.totalorder %s25, 0
      %p73 = por %p71, %p72
      %s75 = sadd.s32 %s74, 1
      %p78 = scmp.eq.s32.totalorder %s19, 1
      %p79 = scmp.ne.s32.totalorder %s74, %s76
      %p80 = scmp.eq.s32.totalorder %s19, 0
      %p81 = por %p79, %p80
      %p82 = scmp.ne.s32.totalorder %s74, %s76
      %p83 = scmp.eq.s32.totalorder %s24, 1
      %p84 = por %p82, %p83
      %p85 = scmp.ne.s32.totalorder %s76, %s77
      %p86 = scmp.eq.s32.totalorder %s24, 0
      %p87 = por %p85, %p86
      %p88 = scmp.ne.s32.totalorder %s76, %s77
      %p89 = scmp.eq.s32.totalorder %s25, 1
      %p90 = por %p88, %p89
      %p92 = scmp.ne.s32.totalorder %s77, %s91
      %p93 = scmp.eq.s32.totalorder %s25, 0
      %p94 = por %p92, %p93
      %s96 = sadd.s32 %s95, 1
      %p99 = scmp.eq.s32.totalorder %s19, 1
      %p100 = scmp.ne.s32.totalorder %s95, %s97
      %p101 = scmp.eq.s32.totalorder %s19, 0
      %p102 = por %p100, %p101
      %p103 = scmp.ne.s32.totalorder %s95, %s97
      %p104 = scmp.eq.s32.totalorder %s24, 1
      %p105 = por %p103, %p104
      %p106 = scmp.ne.s32.totalorder %s97, %s98
      %p107 = scmp.eq.s32.totalorder %s24, 0
      %p108 = por %p106, %p107
      %p109 = scmp.ne.s32.totalorder %s97, %s98
      %p110 = scmp.eq.s32.totalorder %s25, 1
      %p111 = por %p109, %p110
      %p113 = scmp.ne.s32.totalorder %s98, %s112
      %p114 = scmp.eq.s32.totalorder %s25, 0
      %p115 = por %p113, %p114
      %s117 = sadd.s32 %s116, 1
      %p120 = scmp.eq.s32.totalorder %s19, 1
      %p121 = scmp.ne.s32.totalorder %s116, %s118
      %p122 = scmp.eq.s32.totalorder %s19, 0
      %p123 = por %p121, %p122
      %p124 = scmp.ne.s32.totalorder %s116, %s118
      %p125 = scmp.eq.s32.totalorder %s24, 1
      %p126 = por %p124, %p125
      %p127 = scmp.ne.s32.totalorder %s118, %s119
      %p128 = scmp.eq.s32.totalorder %s24, 0
      %p129 = por %p127, %p128
      %p130 = scmp.ne.s32.totalorder %s118, %s119
      %p131 = scmp.eq.s32.totalorder %s25, 1
      %p132 = por %p130, %p131
      %p134 = scmp.ne.s32.totalorder %s119, %s133
      %p135 = scmp.eq.s32.totalorder %s25, 0
      %p136 = por %p134, %p135
      %s137 = ssub.s32 %s19, %s26
      %p138 = scmp.eq.s32.totalorder %s137, 0
      %s140 = sadd.s32 %s139, 1
      %s141 = scalar_select %p138, %s139, %s140
      %p144 = pneg %p138
      %p145 = scmp.eq.s32.totalorder %s19, 1
      %p146 = por %p144, %p145
      %p147 = scmp.ne.s32.totalorder %s139, %s142
      %p148 = scmp.eq.s32.totalorder %s19, 0
      %p149 = por %p147, %p148
      %p150 = scmp.ne.s32.totalorder %s139, %s142
      %p151 = scmp.eq.s32.totalorder %s24, 1
      %p152 = por %p150, %p151
      %p153 = scmp.ne.s32.totalorder %s142, %s143
      %p154 = scmp.eq.s32.totalorder %s24, 0
      %p155 = por %p153, %p154
      %p156 = scmp.ne.s32.totalorder %s142, %s143
      %p157 = scmp.eq.s32.totalorder %s25, 1
      %p158 = por %p156, %p157
      %p160 = scmp.ne.s32.totalorder %s143, %s159
      %p161 = scmp.eq.s32.totalorder %s25, 0
      %p162 = por %p160, %p161
      %p163 = scmp.le.s32.totalorder 1, %s19
      %p164 = scmp.lt.s32.totalorder %s19, 3
      %p165 = pnand %p163, %p164
      %p166 = pneg %p165
      // Predicated region
      $region9: #{tpu_custom_call.1} parent=5 // pred_check
        _
      $region10: #{tpu_custom_call.1} parent=5 // pred_check_branch
        %168 = sbr.rel (%p165) target = $region12
      $region11: #{tpu_custom_call.1} parent=5 // pred_region
        %s169 = ssub.s32 %s19, 1
        // Predicated region
        $region13: #{tpu_custom_call.1} parent=11 // pred_check
          %p170 = pneg %p66
        $region14: #{tpu_custom_call.1} parent=11 // pred_check_branch
          %172 = sbr.rel (%p170) target = $region16
        $region15: #{tpu_custom_call.1} parent=11 // pred_region
          %s174 = ssub.s32 512, 512
          %175 = vsyncadd [#allocation6], %s174
          %s176 = sshll.u32 [#allocation5], 4
          %s177 = int_to_ptr.vmem [resolvable:$true] %s176
          %182 = dma.hbm_to_vmem [thread:$0]  %s1, 512, %s177, [#allocation6], 128, 128, 8
        $region16: #{tpu_custom_call.1} parent=11 // pred_fallthru
          _
        // Predicated region
        $region17: #{tpu_custom_call.1} parent=11 // pred_check
          %p183 = pneg %p87
        $region18: #{tpu_custom_call.1} parent=11 // pred_check_branch
          %185 = sbr.rel (%p183) target = $region20
        $region19: #{tpu_custom_call.1} parent=11 // pred_region
          %s187 = ssub.s32 16, 16
          %188 = vsyncadd [#allocation6], %s187
          %s190 = sshll.u32 [#allocation7], 4
          %s191 = int_to_ptr.vmem [resolvable:$true] %s190
          %193 = dma.hbm_to_vmem [thread:$0]  %s2, 16, %s191, [#allocation6]
        $region20: #{tpu_custom_call.1} parent=11 // pred_fallthru
          _
        // Predicated region
        $region21: #{tpu_custom_call.1} parent=11 // pred_check
          %p194 = pneg %p108
        $region22: #{tpu_custom_call.1} parent=11 // pred_check_branch
          %196 = sbr.rel (%p194) target = $region24
        $region23: #{tpu_custom_call.1} parent=11 // pred_region
          %s198 = ssub.s32 2048, 2048
          %199 = vsyncadd [#allocation9], %s198
          %s200 = sshll.u32 [#allocation8], 4
          %s201 = int_to_ptr.vmem [resolvable:$true] %s200
          %206 = dma.hbm_to_vmem [thread:$0]  %s3, 2048, %s201, [#allocation9], 128, 128, 8
        $region24: #{tpu_custom_call.1} parent=11 // pred_fallthru
          _
        // Predicated region
        $region25: #{tpu_custom_call.1} parent=11 // pred_check
          %p207 = pneg %p129
        $region26: #{tpu_custom_call.1} parent=11 // pred_check_branch
          %209 = sbr.rel (%p207) target = $region28
        $region27: #{tpu_custom_call.1} parent=11 // pred_region
          %s211 = ssub.s32 16, 16
          %212 = vsyncadd [#allocation9], %s211
          %s214 = sshll.u32 [#allocation10], 4
          %s215 = int_to_ptr.vmem [resolvable:$true] %s214
          %217 = dma.hbm_to_vmem [thread:$0]  %s4, 16, %s215, [#allocation9]
        $region28: #{tpu_custom_call.1} parent=11 // pred_fallthru
          _
      $region12: #{tpu_custom_call.1} parent=5 // pred_fallthru
        _
      %p218 = scmp.lt.s32.totalorder %s19, 2
      // Predicated region
      $region29: #{tpu_custom_call.1} parent=5 // pred_check
        %p219 = pneg %p218
      $region30: #{tpu_custom_call.1} parent=5 // pred_check_branch
        %221 = sbr.rel (%p219) target = $region32
      $region31: #{tpu_custom_call.1} parent=5 // pred_region
        // Predicated region
        $region33: #{tpu_custom_call.1} parent=31 // pred_check
          %p222 = pneg %p39
        $region34: #{tpu_custom_call.1} parent=31 // pred_check_branch
          %224 = sbr.rel (%p222) target = $region36
        $region35: #{tpu_custom_call.1} parent=31 // pred_region
          %s225 = sand.u32 %s29, 1
          %s226 = scalar_lea.sflag [#allocation3], %s225
          %s227 = sand.u32 %s29, 1
          %s228 = smul.addr %s227, 8
          %s229 = scalar_lea.vmem [#allocation2], %s228
          %s231 = ssub.s32 128, 128
          %232 = vsyncadd %s226, %s231
          %s233 = smul.addr %s19, 128
          %s234 = scalar_lea.hbm %s0, %s233
          %s236 = sshll.u32 %s229, 4
          %s237 = int_to_ptr.vmem [resolvable:$true] %s236
          %239 = dma.hbm_to_vmem [thread:$0]  %s234, 128, %s237, %s226
        $region36: #{tpu_custom_call.1} parent=31 // pred_fallthru
          _
      $region32: #{tpu_custom_call.1} parent=5 // pred_fallthru
        _
      %p240 = scmp.le.s32.totalorder 1, %s19
      %p241 = scmp.lt.s32.totalorder %s19, 3
      %p242 = pnand %p240, %p241
      %p243 = pneg %p242
      // Predicated region
      $region37: #{tpu_custom_call.1} parent=5 // pred_check
        _
      $region38: #{tpu_custom_call.1} parent=5 // pred_check_branch
        %245 = sbr.rel (%p242) target = $region40
      $region39: #{tpu_custom_call.1} parent=5 // pred_region
        %s246 = ssub.s32 %s19, 1
        %s247 = sand.u32 %s32, 1
        %s248 = scalar_lea.sflag [#allocation3], %s247
        %s249 = sand.u32 %s32, 1
        %s250 = smul.addr %s249, 8
        %s251 = scalar_lea.vmem [#allocation2], %s250
        // Predicated region
        $region41: #{tpu_custom_call.1} parent=39 // pred_check
          %p252 = pneg %p45
        $region42: #{tpu_custom_call.1} parent=39 // pred_check_branch
          %254 = sbr.rel (%p252) target = $region44
        $region43: #{tpu_custom_call.1} parent=39 // pred_region
          %255 = dma.done %s248, 128
        $region44: #{tpu_custom_call.1} parent=39 // pred_fallthru
          _
        // Predicated region
        $region45: #{tpu_custom_call.1} parent=39 // pred_check
          %p256 = pneg %p66
        $region46: #{tpu_custom_call.1} parent=39 // pred_check_branch
          %258 = sbr.rel (%p256) target = $region48
        $region47: #{tpu_custom_call.1} parent=39 // pred_region
          %259 = dma.done [#allocation6], 512
        $region48: #{tpu_custom_call.1} parent=39 // pred_fallthru
          _
        // Predicated region
        $region49: #{tpu_custom_call.1} parent=39 // pred_check
          %p260 = pneg %p87
        $region50: #{tpu_custom_call.1} parent=39 // pred_check_branch
          %262 = sbr.rel (%p260) target = $region52
        $region51: #{tpu_custom_call.1} parent=39 // pred_region
          %263 = dma.done [#allocation6], 16
        $region52: #{tpu_custom_call.1} parent=39 // pred_fallthru
          _
        // Predicated region
        $region53: #{tpu_custom_call.1} parent=39 // pred_check
          %p264 = pneg %p108
        $region54: #{tpu_custom_call.1} parent=39 // pred_check_branch
          %266 = sbr.rel (%p264) target = $region56
        $region55: #{tpu_custom_call.1} parent=39 // pred_region
          %267 = dma.done [#allocation9], 2048
        $region56: #{tpu_custom_call.1} parent=39 // pred_fallthru
          _
        // Predicated region
        $region57: #{tpu_custom_call.1} parent=39 // pred_check
          %p268 = pneg %p129
        $region58: #{tpu_custom_call.1} parent=39 // pred_check_branch
          %270 = sbr.rel (%p268) target = $region60
        $region59: #{tpu_custom_call.1} parent=39 // pred_region
          %271 = dma.done [#allocation9], 16
        $region60: #{tpu_custom_call.1} parent=39 // pred_fallthru
          _
        %s272 = sand.u32 %s32, 1
        %s273 = scalar_lea.sflag [#allocation3], %s272
        %s274 = sand.u32 %s32, 1
        %s275 = smul.addr %s274, 8
        %s276 = scalar_lea.vmem [#allocation2], %s275
        %p277 = pneg %p45
        %p278 = pneg %p42
        %p279 = pneg %p66
        %p280 = pneg %p63
        %p281 = pneg %p87
        %p282 = pneg %p84
        %p283 = pneg %p108
        %p284 = pneg %p105
        %p285 = pneg %p129
        %p286 = pneg %p126
        %p287 = pneg %p155
        %p288 = pneg %p152
        %s289 = sand.u32 %s142, 1
        %s290 = scalar_lea.sflag [#allocation4], %s289
        %s291 = sand.u32 %s142, 1
        %s292 = smul.addr %s291, 8
        %s293 = scalar_lea.vmem [#allocation11], %s292
        %v294 = vld [vmem:[%s251] sm:$0xff]
        %v295 = vld [vmem:[#allocation5] sm:$0xff]
        %v296 = vld [vmem:[#allocation5 + $0x8] sm:$0xff]
        %v297 = vld [vmem:[#allocation5 + $0x10] sm:$0xff]
        %v298 = vld [vmem:[#allocation5 + $0x18] sm:$0xff]
        %v299 = vld [vmem:[#allocation7] sm:$0x1]
        %v301 = vlaneseq
        %v302 = vshrl.u32 %v301, 7
        %v303 = vsub.s32 0, %v302
        %v304 = vrot.slane %v299, %v303
        %vm306 = vcmask 261120
        %v308 = vsel %vm306, %v294, 0
        %310 = vmatprep.subr.mxu0 0.0
        %311 = vmatpush1.msra.mxu0 %v295
        %312 = vmatprep.subr.mxu0 0.0
        %313 = vmatpush1.msra.mxu0 %v296
        %314 = vmatprep.subr.mxu0 0.0
        %315 = vmatpush1.msra.mxu0 %v297
        %316 = vmatprep.subr.mxu0 0.0
        %317 = vmatpush1.msra.mxu0 %v298
        %318 = vmatprep.subr.mxu0 0.0
        %319 = vmatpush1.msra.mxu0 0.0
        %320 = vmatprep.subr.mxu0 0.0
        %321 = vmatpush1.msra.mxu0 0.0
        %322 = vmatprep.subr.mxu0 0.0
        %323 = vmatpush1.msra.mxu0 0.0
        %324 = vmatprep.subr.mxu0 0.0
        %325 = vmatpush1.msra.mxu0 0.0
        %326 = vmatprep.subr.mxu0 0.0
        %327 = vmatpush1.msra.mxu0 0.0
        %328 = vmatprep.subr.mxu0 0.0
        %329 = vmatpush1.msra.mxu0 0.0
        %330 = vmatprep.subr.mxu0 0.0
        %331 = vmatpush1.msra.mxu0 0.0
        %332 = vmatprep.subr.mxu0 0.0
        %333 = vmatpush1.msra.mxu0 0.0
        %334 = vmatprep.subr.mxu0 0.0
        %335 = vmatpush1.msra.mxu0 0.0
        %336 = vmatprep.subr.mxu0 0.0
        %337 = vmatpush1.msra.mxu0 0.0
        %338 = vmatprep.subr.mxu0 0.0
        %339 = vmatpush1.msra.mxu0 0.0
        %340 = vmatprep.subr.mxu0 0.0
        %341 = vmatpush1.msra.mxu0 0.0
        %342 = vmatprep.subr.mxu0 0.0
        %343 = vmatpush1.msra.mxu0 0.0
        %344 = vmatprep.subr.mxu0 0.0
        %345 = vmatpush1.msra.mxu0 0.0
        %346 = vmatprep.subr.mxu0 0.0
        %347 = vmatpush1.msra.mxu0 0.0
        %348 = vmatprep.subr.mxu0 0.0
        %349 = vmatpush1.msra.mxu0 0.0
        %350 = vmatprep.subr.mxu0 0.0
        %351 = vmatpush1.msra.mxu0 0.0
        %352 = vmatprep.subr.mxu0 0.0
        %353 = vmatpush1.msra.mxu0 0.0
        %354 = vmatprep.subr.mxu0 0.0
        %355 = vmatpush1.msra.mxu0 0.0
        %356 = vmatprep.subr.mxu0 0.0
        %357 = vmatpush1.msra.mxu0 0.0
        %358 = vmatprep.subr.mxu0 0.0
        %359 = vmatpush1.msra.mxu0 0.0
        %360 = vmatprep.subr.mxu0 0.0
        %361 = vmatpush1.msra.mxu0 0.0
        %362 = vmatprep.subr.mxu0 0.0
        %363 = vmatpush1.msra.mxu0 0.0
        %364 = vmatprep.subr.mxu0 0.0
        %365 = vmatpush1.msra.mxu0 0.0
        %366 = vmatprep.subr.mxu0 0.0
        %367 = vmatpush1.msra.mxu0 0.0
        %368 = vmatprep.subr.mxu0 0.0
        %369 = vmatpush1.msra.mxu0 0.0
        %370 = vmatprep.subr.mxu0 0.0
        %371 = vmatpush1.msra.mxu0 0.0
        %372 = vmatprep.subr.mxu0 0.0
        %373 = vmatpush1.msra.mxu0 0.0
        %374 = vmatprep.mubr.f32.mxu0 0.0
        %375 = vmatmul.mubr.f32.gmra.mrb[0].mxu0 %v308
        %v376 = vpop.f32.mrb[0].mxu0
        %v377 = vadd.f32 %v304, %v376
        %v378 = vpop.f32.mrb[0].mxu0
        %379 = vdwg.mxu0
        %v380 = vmul.f32 %v377, %v377
        %381 = vadd.xlane.f32.xlu0 %v380
        %v382 = vpop.xlane.xlu0 %381
        %v383 = vrsqrt.pop %v382
        %v384 = vmul.f32 %v382, %v383
        %vm385 = vcmp.eq.f32.partialorder %v382, inf
        %v386 = vsel %vm385, %v382, %v384
        %vm387 = vcmp.eq.f32.partialorder %v382, 0.0
        %v388 = vand.u32 %v382, 2147483648
        %v389 = vsel %vm387, %v388, %v386
        %v390 = vld [vmem:[#allocation8] sm:$0xff]
        %v391 = vld [vmem:[#allocation8 + $0x8] sm:$0xff]
        %v392 = vld [vmem:[#allocation8 + $0x10] sm:$0xff]
        %v393 = vld [vmem:[#allocation8 + $0x18] sm:$0xff]
        %v394 = vld [vmem:[#allocation8 + $0x20] sm:$0xff]
        %v395 = vld [vmem:[#allocation8 + $0x28] sm:$0xff]
        %v396 = vld [vmem:[#allocation8 + $0x30] sm:$0xff]
        %v397 = vld [vmem:[#allocation8 + $0x38] sm:$0xff]
        %v398 = vld [vmem:[#allocation8 + $0x40] sm:$0xff]
        %v399 = vld [vmem:[#allocation8 + $0x48] sm:$0xff]
        %v400 = vld [vmem:[#allocation8 + $0x50] sm:$0xff]
        %v401 = vld [vmem:[#allocation8 + $0x58] sm:$0xff]
        %v402 = vld [vmem:[#allocation8 + $0x60] sm:$0xff]
        %v403 = vld [vmem:[#allocation8 + $0x68] sm:$0xff]
        %v404 = vld [vmem:[#allocation8 + $0x70] sm:$0xff]
        %v405 = vld [vmem:[#allocation8 + $0x78] sm:$0xff]
        %406 = vmatprep.subr.mxu0 0.0
        %407 = vmatpush1.xpose.msra.mxu0 %v390
        %408 = vmatprep.subr.mxu0 0.0
        %409 = vmatpush1.xpose.msra.mxu0 %v391
        %410 = vmatprep.subr.mxu0 0.0
        %411 = vmatpush1.xpose.msra.mxu0 %v392
        %412 = vmatprep.subr.mxu0 0.0
        %413 = vmatpush1.xpose.msra.mxu0 %v393
        %414 = vmatprep.subr.mxu0 0.0
        %415 = vmatpush1.xpose.msra.mxu0 %v394
        %416 = vmatprep.subr.mxu0 0.0
        %417 = vmatpush1.xpose.msra.mxu0 %v395
        %418 = vmatprep.subr.mxu0 0.0
        %419 = vmatpush1.xpose.msra.mxu0 %v396
        %420 = vmatprep.subr.mxu0 0.0
        %421 = vmatpush1.xpose.msra.mxu0 %v397
        %422 = vmatprep.subr.mxu0 0.0
        %423 = vmatpush1.xpose.msra.mxu0 %v398
        %424 = vmatprep.subr.mxu0 0.0
        %425 = vmatpush1.xpose.msra.mxu0 %v399
        %426 = vmatprep.subr.mxu0 0.0
        %427 = vmatpush1.xpose.msra.mxu0 %v400
        %428 = vmatprep.subr.mxu0 0.0
        %429 = vmatpush1.xpose.msra.mxu0 %v401
        %430 = vmatprep.subr.mxu0 0.0
        %431 = vmatpush1.xpose.msra.mxu0 %v402
        %432 = vmatprep.subr.mxu0 0.0
        %433 = vmatpush1.xpose.msra.mxu0 %v403
        %434 = vmatprep.subr.mxu0 0.0
        %435 = vmatpush1.xpose.msra.mxu0 %v404
        %436 = vmatprep.subr.mxu0 0.0
        %437 = vmatpush1.xpose.msra.mxu0 %v405
        %438 = vmatprep.subr.mxu0 0.0
        %439 = vmatpush1.xpose.msra.mxu0 0.0
        %440 = vmatprep.subr.mxu0 0.0
        %441 = vmatpush1.xpose.msra.mxu0 0.0
        %442 = vmatprep.subr.mxu0 0.0
        %443 = vmatpush1.xpose.msra.mxu0 0.0
        %444 = vmatprep.subr.mxu0 0.0
        %445 = vmatpush1.xpose.msra.mxu0 0.0
        %446 = vmatprep.subr.mxu0 0.0
        %447 = vmatpush1.xpose.msra.mxu0 0.0
        %448 = vmatprep.subr.mxu0 0.0
        %449 = vmatpush1.xpose.msra.mxu0 0.0
        %450 = vmatprep.subr.mxu0 0.0
        %451 = vmatpush1.xpose.msra.mxu0 0.0
        %452 = vmatprep.subr.mxu0 0.0
        %453 = vmatpush1.xpose.msra.mxu0 0.0
        %454 = vmatprep.subr.mxu0 0.0
        %455 = vmatpush1.xpose.msra.mxu0 0.0
        %456 = vmatprep.subr.mxu0 0.0
        %457 = vmatpush1.xpose.msra.mxu0 0.0
        %458 = vmatprep.subr.mxu0 0.0
        %459 = vmatpush1.xpose.msra.mxu0 0.0
        %460 = vmatprep.subr.mxu0 0.0
        %461 = vmatpush1.xpose.msra.mxu0 0.0
        %462 = vmatprep.subr.mxu0 0.0
        %463 = vmatpush1.xpose.msra.mxu0 0.0
        %464 = vmatprep.subr.mxu0 0.0
        %465 = vmatpush1.xpose.msra.mxu0 0.0
        %466 = vmatprep.subr.mxu0 0.0
        %467 = vmatpush1.xpose.msra.mxu0 0.0
        %468 = vmatprep.subr.mxu0 0.0
        %469 = vmatpush1.xpose.msra.mxu0 0.0
        %470 = vmatprep.mubr.f32.mxu0 0.0
        %471 = vmatmul.mubr.f32.gmra.mrb[0].mxu0 %v377
        %v472 = vpop.f32.mrb[0].mxu0
        %v473 = vadd.f32 0.0, %v472
        %v474 = vpop.f32.mrb[0].mxu0
        %475 = vdwg.mxu0
        %v476 = vld [vmem:[#allocation10] sm:$0x1]
        %v478 = vlaneseq
        %v479 = vshrl.u32 %v478, 7
        %v480 = vsub.s32 0, %v479
        %v481 = vrot.slane %v476, %v480
        %v483 = vmul.f32 %v389, %v481
        %v484 = vmax.f32 %v483, 1e-08
        %v485 = vrcp.pop %v484
        %v486 = vmul.f32 %v473, %v485
        %v487 = vmul.f32 %v486, 10.0
        %488 = vst [vmem:[%s293] sm:$0xff] %v487
        %s489 = sand.u32 %s142, 1
        %s490 = scalar_lea.sflag [#allocation4], %s489
        %s491 = sand.u32 %s142, 1
        %s492 = smul.addr %s491, 8
        %s493 = scalar_lea.vmem [#allocation11], %s492
        // Predicated region
        $region61: #{tpu_custom_call.1} parent=39 // pred_check
          %p494 = pneg %p152
        $region62: #{tpu_custom_call.1} parent=39 // pred_check_branch
          %496 = sbr.rel (%p494) target = $region64
        $region63: #{tpu_custom_call.1} parent=39 // pred_region
          %s498 = ssub.s32 128, 128
          %499 = vsyncadd %s490, %s498
          %s500 = smul.addr %s24, 128
          %s501 = scalar_lea.hbm %s5, %s500
          %s503 = sshll.u32 %s493, 4
          %s504 = int_to_ptr.vmem [resolvable:$true] %s503
          %506 = dma.vmem_to_hbm [thread:$0]  %s504, 128, %s501, %s490
        $region64: #{tpu_custom_call.1} parent=39 // pred_fallthru
          _
      $region40: #{tpu_custom_call.1} parent=5 // pred_fallthru
        _
      %p507 = scmp.le.s32.totalorder 2, %s19
      // Predicated region
      $region65: #{tpu_custom_call.1} parent=5 // pred_check
        %p508 = pneg %p507
      $region66: #{tpu_custom_call.1} parent=5 // pred_check_branch
        %510 = sbr.rel (%p508) target = $region68
      $region67: #{tpu_custom_call.1} parent=5 // pred_region
        %s511 = ssub.s32 %s19, 2
        // Predicated region
        $region69: #{tpu_custom_call.1} parent=67 // pred_check
          %p512 = pneg %p158
        $region70: #{tpu_custom_call.1} parent=67 // pred_check_branch
          %514 = sbr.rel (%p512) target = $region72
        $region71: #{tpu_custom_call.1} parent=67 // pred_region
          %s515 = sand.u32 %s143, 1
          %s516 = scalar_lea.sflag [#allocation4], %s515
          %s517 = sand.u32 %s143, 1
          %s518 = smul.addr %s517, 8
          %s519 = scalar_lea.vmem [#allocation11], %s518
          %520 = dma.done %s516, 128
        $region72: #{tpu_custom_call.1} parent=67 // pred_fallthru
          _
      $region68: #{tpu_custom_call.1} parent=5 // pred_fallthru
        _
    $region6: #{tpu_custom_call.1} parent=1 // loop_footer
      %s23 = sadd.s32 1, %s19
    $region7: #{tpu_custom_call.1} parent=1 // loop_footer_branch
      %18 = sbr.rel target = $region3
    $region8: #{tpu_custom_call.1} parent=1 // loop_exit
      _
    %521 = vsyncpa [#allocation3], 1
    %s522 = scalar_lea.sflag [#allocation3], 1
    %523 = vsyncpa %s522, 1
    %524 = vsyncpa [#allocation6], 1
    %525 = vsyncpa [#allocation9], 1
    %526 = vsyncpa [#allocation4], 1
    %s527 = scalar_lea.sflag [#allocation4], 1
    %528 = vsyncpa %s527, 1

</llo_original>
